<compile_context>
chip_gen: v7x
topology: tpu7x:2x2x1
jax: 0.10.0
libtpu: 0.0.40
codegen_flags: <defaults>
</compile_context>

<pallas_src>
import functools

import jax
import jax.numpy as jnp
from jax import lax
from jax.experimental import pallas as pl
from jax.experimental.pallas import tpu as pltpu

NEG_SLOPE = 0.01      # nn.LeakyReLU default negative_slope
TB_TARGET = 8192      # batch tile target (lanes); sized per perf review
CH_TARGET = 512       # in-kernel chunk width (lanes) to bound vreg pressure


def _round_up(x, m):
    return ((x + m - 1) // m) * m


def _five_by_five_kernel(x_ref, wpack_ref, wlin_ref, o_ref, *, ch, n_chunks):
    # Packed small operands (resident in VMEM, loaded once per grid step).
    wc = wpack_ref[:, 0:25]     # (sz, 25)  conv weight (flattened 5x5)
    w3 = wpack_ref[:, 25:26]    # (sz, 1)   final Linear(sz,1) weight
    bc = wpack_ref[:, 26:27]    # (sz, 1)
    b1 = wpack_ref[:, 27:28]    # (sz, 1)
    b2 = wpack_ref[:, 28:29]    # (sz, 1)
    b3 = wpack_ref[0:1, 29:30]  # (1, 1)
    w1 = wlin_ref[0]            # (sz, sz)
    w2 = wlin_ref[1]            # (sz, sz)

    def body(j, carry):
        off = pl.multiple_of(j * ch, ch)
        xj = x_ref[pl.ds(off, ch), :]                       # (ch, 25) f32
        # conv-as-matmul, contracting last-vs-last dims: (sz,25)·(ch,25) -> (sz,ch)
        h = lax.dot_general(wc, xj, (((1,), (1,)), ((), ())),
                            preferred_element_type=jnp.float32) + bc
        h = jnp.maximum(h, NEG_SLOPE * h)
        # Linear 1 + LeakyReLU (+ Dropout == identity in eval mode)
        h = jnp.dot(w1, h, preferred_element_type=jnp.float32) + b1
        h = jnp.maximum(h, NEG_SLOPE * h)
        # Linear 2 + LeakyReLU (+ Dropout == identity in eval mode)
        h = jnp.dot(w2, h, preferred_element_type=jnp.float32) + b2
        h = jnp.maximum(h, NEG_SLOPE * h)
        # Final Linear(sz, 1): VPU multiply + XLU cross-sublane reduce,
        # lane-dense (1, ch) unmasked store.
        o_ref[:, pl.ds(off, ch)] = (
            jnp.sum(h * w3, axis=0, keepdims=True) + b3).astype(o_ref.dtype)
        return carry

    lax.fori_loop(0, n_chunks, body, 0, unroll=True)


def init_params(sz, key):
    """Deterministic parameter init matching the PyTorch module's shapes."""
    ks = jax.random.split(key, 8)
    wc = jax.random.normal(ks[0], (sz, 1, 5, 5), jnp.float32) * 0.2
    bc = jax.random.normal(ks[1], (sz,), jnp.float32) * 0.1
    w1 = jax.random.normal(ks[2], (sz, sz), jnp.float32) * (1.0 / jnp.sqrt(sz))
    b1 = jax.random.normal(ks[3], (sz,), jnp.float32) * 0.1
    w2 = jax.random.normal(ks[4], (sz, sz), jnp.float32) * (1.0 / jnp.sqrt(sz))
    b2 = jax.random.normal(ks[5], (sz,), jnp.float32) * 0.1
    w3 = jax.random.normal(ks[6], (1, sz), jnp.float32) * (1.0 / jnp.sqrt(sz))
    b3 = jax.random.normal(ks[7], (1,), jnp.float32) * 0.1
    return dict(wc=wc, bc=bc, w1=w1, b1=b1, w2=w2, b2=b2, w3=w3, b3=b3)


def five_by_five_forward(x_nchw, params, *, tb_target=TB_TARGET, ch_target=CH_TARGET):
    """x_nchw: (B, 1, 5, 5) float32  ->  (B, 1) float32."""
    B = x_nchw.shape[0]
    assert x_nchw.shape[1:] == (1, 5, 5), "module requires 5x5 single-channel input"
    sz = params["wc"].shape[0]

    # --- tiling: adaptive batch tile, balanced across grid blocks -------------
    if B <= ch_target:
        ch = max(128, _round_up(B, 128))
        tb = ch
    else:
        ch = ch_target
        n_blk = pl.cdiv(B, tb_target)
        tb = _round_up(pl.cdiv(B, n_blk), ch)
    n_blocks = pl.cdiv(B, tb)
    B_pad = n_blocks * tb
    n_chunks = tb // ch

    # x stays in its natural (B, 25) f32 layout: no HBM transpose/cast pass.
    x_flat = x_nchw.reshape(B, 25)
    if B_pad != B:
        x_flat = jnp.pad(x_flat, ((0, B_pad - B), (0, 0)))

    # --- pack small operands (all f32): (sz, 32) misc pack + (2, sz, sz) ------
    wc = params["wc"].reshape(sz, 25)
    w3 = params["w3"].reshape(sz, 1)
    bc = params["bc"].reshape(sz, 1)
    b1 = params["b1"].reshape(sz, 1)
    b2 = params["b2"].reshape(sz, 1)
    b3 = jnp.broadcast_to(params["b3"].reshape(1, 1), (sz, 1))
    wpack = jnp.concatenate(
        [wc, w3, bc, b1, b2, b3, jnp.zeros((sz, 2), jnp.float32)], axis=1)  # (sz, 32)
    wlin = jnp.stack([params["w1"], params["w2"]])                           # (2, sz, sz)

    kernel = functools.partial(_five_by_five_kernel, ch=ch, n_chunks=n_chunks)

    out = pl.pallas_call(
        kernel,
        out_shape=jax.ShapeDtypeStruct((1, B_pad), jnp.float32),
        grid=(n_blocks,),
        in_specs=[
            pl.BlockSpec((tb, 25), lambda i: (i, 0)),          # x: streamed per tile
            pl.BlockSpec((sz, 32), lambda i: (0, 0)),          # packed small weights
            pl.BlockSpec((2, sz, sz), lambda i: (0, 0, 0)),    # w1 / w2
        ],
        out_specs=pl.BlockSpec((1, tb), lambda i: (0, i)),     # lane-dense output
        compiler_params=pltpu.CompilerParams(
            dimension_semantics=("parallel",),
            vmem_limit_bytes=32 * 1024 * 1024),
    )(x_flat, wpack, wlin)

    return out[0, :B].reshape(B, 1)


def _reference_forward(x_nchw, params):
    """Pure-JAX f32 reference mirroring the PyTorch forward (eval mode)."""
    B = x_nchw.shape[0]
    sz = params["wc"].shape[0]

    def leaky(v):
        return jnp.where(v > 0, v, NEG_SLOPE * v)

    x = x_nchw.reshape(B, 25)
    h = x @ params["wc"].reshape(sz, 25).T + params["bc"]
    h = leaky(h)
    h = h @ params["w1"].T + params["b1"]
    h = leaky(h)
    h = h @ params["w2"].T + params["b2"]
    h = leaky(h)
    return h @ params["w3"].T + params["b3"]


if __name__ == "__main__":
    SZ = 32          # "sz" in the module
    DP = 0.1         # "dp" (dropout prob) — identity in eval mode
    B = 2

    key = jax.random.PRNGKey(0)
    k_x, k_p = jax.random.split(key)
    x = jax.random.normal(k_x, (B, 1, 5, 5), jnp.float32)
    params = init_params(SZ, k_p)

    out = jax.block_until_ready(five_by_five_forward(x, params))

    ref = _reference_forward(x, params)
    assert out.shape == (B, 1), out.shape
    # Kernel is all-f32 now; tight tolerance.
    assert jnp.allclose(out, ref, atol=2e-3, rtol=2e-3), (out, ref)

    print("KERNEL_OK")
</pallas_src>

<mosaic_0001>
module attributes {stable_mosaic.version = 11 : i64} {
  func.func @_five_by_five_kernel(%arg0: i32, %arg1: memref<128x25xf32, #tpu.memory_space<vmem>>, %arg2: memref<32x32xf32, #tpu.memory_space<vmem>>, %arg3: memref<2x32x32xf32, #tpu.memory_space<vmem>>, %arg4: memref<1x128xf32, #tpu.memory_space<vmem>>) attributes {dimension_semantics = [#tpu.dimension_semantics<parallel>], iteration_bounds = array<i64: 1>, scalar_prefetch = 0 : i64, scratch_operands = 0 : i64, tpu.core_type = #tpu.core_type<tc>, window_params = [{transform_indices = @transform_0, window_bounds = array<i64: 128, 25>}, {pipeline_mode = #tpu.pipeline_mode<synchronous>, transform_indices = @transform_1, window_bounds = array<i64: 32, 32>}, {pipeline_mode = #tpu.pipeline_mode<synchronous>, transform_indices = @transform_2, window_bounds = array<i64: 2, 32, 32>}, {transform_indices = @transform_3, window_bounds = array<i64: 1, 128>}]} {
    %c0 = arith.constant 0 : index
    %c0_0 = arith.constant 0 : index
    %0 = vector.load %arg2[%c0, %c0_0] : memref<32x32xf32, #tpu.memory_space<vmem>>, vector<32x25xf32>
    %c0_1 = arith.constant 0 : index
    %c25 = arith.constant 25 : index
    %1 = vector.load %arg2[%c0_1, %c25] : memref<32x32xf32, #tpu.memory_space<vmem>>, vector<32x1xf32>
    %c0_2 = arith.constant 0 : index
    %c26 = arith.constant 26 : index
    %2 = vector.load %arg2[%c0_2, %c26] : memref<32x32xf32, #tpu.memory_space<vmem>>, vector<32x1xf32>
    %c0_3 = arith.constant 0 : index
    %c27 = arith.constant 27 : index
    %3 = vector.load %arg2[%c0_3, %c27] : memref<32x32xf32, #tpu.memory_space<vmem>>, vector<32x1xf32>
    %c0_4 = arith.constant 0 : index
    %c28 = arith.constant 28 : index
    %4 = vector.load %arg2[%c0_4, %c28] : memref<32x32xf32, #tpu.memory_space<vmem>>, vector<32x1xf32>
    %c0_5 = arith.constant 0 : index
    %c29 = arith.constant 29 : index
    %5 = vector.load %arg2[%c0_5, %c29] : memref<32x32xf32, #tpu.memory_space<vmem>>, vector<1x1xf32>
    %c0_6 = arith.constant 0 : index
    %c0_7 = arith.constant 0 : index
    %c0_8 = arith.constant 0 : index
    %6 = vector.load %arg3[%c0_6, %c0_7, %c0_8] : memref<2x32x32xf32, #tpu.memory_space<vmem>>, vector<1x32x32xf32>
    %7 = vector.shape_cast %6 : vector<1x32x32xf32> to vector<32x32xf32>
    %c1 = arith.constant 1 : index
    %c0_9 = arith.constant 0 : index
    %c0_10 = arith.constant 0 : index
    %8 = vector.load %arg3[%c1, %c0_9, %c0_10] : memref<2x32x32xf32, #tpu.memory_space<vmem>>, vector<1x32x32xf32>
    %9 = vector.shape_cast %8 : vector<1x32x32xf32> to vector<32x32xf32>
    %c0_i32 = arith.constant 0 : i32
    %c128_i32 = arith.constant 128 : i32
    %10 = arith.muli %c0_i32, %c128_i32 : i32
    %11 = tpu.assume_multiple %10, 128 : i32
    %12 = arith.index_cast %11 : i32 to index
    %c0_11 = arith.constant 0 : index
    %13 = vector.load %arg1[%12, %c0_11] : memref<128x25xf32, #tpu.memory_space<vmem>>, vector<128x25xf32>
    %cst = arith.constant dense<0.000000e+00> : vector<32x128xf32>
    %14 = tpu.matmul %0, %13, %cst {dimension_numbers = #tpu.dot_dimension_numbers<[1], [1], [0], [0], [0, 0, 1, 0], [], []>} : vector<32x25xf32>, vector<128x25xf32>, vector<32x128xf32> -> vector<32x128xf32>
    %15 = vector.broadcast %2 : vector<32x1xf32> to vector<32x128xf32>
    %16 = arith.addf %14, %15 : vector<32x128xf32>
    %cst_12 = arith.constant 0.00999999977 : f32
    %17 = vector.broadcast %cst_12 : f32 to vector<32x128xf32>
    %18 = arith.mulf %17, %16 : vector<32x128xf32>
    %19 = arith.maximumf %16, %18 : vector<32x128xf32>
    %cst_13 = arith.constant dense<0.000000e+00> : vector<32x128xf32>
    %20 = tpu.matmul %7, %19, %cst_13 {dimension_numbers = #tpu.dot_dimension_numbers<[1], [0], [0], [1], [0, 0, 1, 1], [], []>} : vector<32x32xf32>, vector<32x128xf32>, vector<32x128xf32> -> vector<32x128xf32>
    %21 = vector.broadcast %3 : vector<32x1xf32> to vector<32x128xf32>
    %22 = arith.addf %20, %21 : vector<32x128xf32>
    %cst_14 = arith.constant 0.00999999977 : f32
    %23 = vector.broadcast %cst_14 : f32 to vector<32x128xf32>
    %24 = arith.mulf %23, %22 : vector<32x128xf32>
    %25 = arith.maximumf %22, %24 : vector<32x128xf32>
    %cst_15 = arith.constant dense<0.000000e+00> : vector<32x128xf32>
    %26 = tpu.matmul %9, %25, %cst_15 {dimension_numbers = #tpu.dot_dimension_numbers<[1], [0], [0], [1], [0, 0, 1, 1], [], []>} : vector<32x32xf32>, vector<32x128xf32>, vector<32x128xf32> -> vector<32x128xf32>
    %27 = vector.broadcast %4 : vector<32x1xf32> to vector<32x128xf32>
    %28 = arith.addf %26, %27 : vector<32x128xf32>
    %cst_16 = arith.constant 0.00999999977 : f32
    %29 = vector.broadcast %cst_16 : f32 to vector<32x128xf32>
    %30 = arith.mulf %29, %28 : vector<32x128xf32>
    %31 = arith.maximumf %28, %30 : vector<32x128xf32>
    %32 = vector.broadcast %1 : vector<32x1xf32> to vector<32x128xf32>
    %33 = arith.mulf %31, %32 : vector<32x128xf32>
    %cst_17 = arith.constant dense<0.000000e+00> : vector<128xf32>
    %34 = vector.multi_reduction <add>, %33, %cst_17 [0] : vector<32x128xf32> to vector<128xf32>
    %35 = vector.shape_cast %34 : vector<128xf32> to vector<1x128xf32>
    %36 = vector.broadcast %5 : vector<1x1xf32> to vector<1x128xf32>
    %37 = arith.addf %35, %36 : vector<1x128xf32>
    %c0_18 = arith.constant 0 : index
    %38 = arith.index_cast %11 : i32 to index
    %39 = vector.load %arg4[%c0_18, %38] : memref<1x128xf32, #tpu.memory_space<vmem>>, vector<1x128xf32>
    tpu.vector_store %arg4[%c0_18, %38], %37 {strides = array<i32>} : memref<1x128xf32, #tpu.memory_space<vmem>>, vector<1x128xf32>,
    %c1_i32 = arith.constant 1 : i32
    return
  }
  func.func @transform_0(%arg0: i32) -> (i32, i32) {
    %c0_i32 = arith.constant 0 : i32
    %c0_i32_0 = arith.constant 0 : i32
    return %arg0, %c0_i32 : i32, i32
  }
  func.func @transform_1(%arg0: i32) -> (i32, i32) {
    %c0_i32 = arith.constant 0 : i32
    %c0_i32_0 = arith.constant 0 : i32
    %c0_i32_1 = arith.constant 0 : i32
    return %c0_i32, %c0_i32_0 : i32, i32
  }
  func.func @transform_2(%arg0: i32) -> (i32, i32, i32) {
    %c0_i32 = arith.constant 0 : i32
    %c0_i32_0 = arith.constant 0 : i32
    %c0_i32_1 = arith.constant 0 : i32
    %c0_i32_2 = arith.constant 0 : i32
    return %c0_i32, %c0_i32_0, %c0_i32_1 : i32, i32, i32
  }
  func.func @transform_3(%arg0: i32) -> (i32, i32) {
    %c0_i32 = arith.constant 0 : i32
    %c0_i32_0 = arith.constant 0 : i32
    return %c0_i32, %arg0 : i32, i32
  }
}

</mosaic_0001>

<llo_original>
// kernel: tpu_custom_call.1
$region0: #{tpu_custom_call.1}
  #allocation0 [shape = 'u32[]', space=smem, size = 0x4, offset = 0x4, fixed_abs, tag = 'smem constant byte address 0x4 - core index']
  #allocation1 [shape = 'u32[144,128]{1,0:T(1,128)}', space=vmem, size = 0x12000, scoped, tag = 'internal scratch']
  %s0 = inlined_call_operand.vmem [shape: f32[128,25], index: 0, kind: input, shape index: {}]
  %s1 = inlined_call_operand.vmem [shape: f32[32,32], index: 1, kind: input, shape index: {}]
  %s2 = inlined_call_operand.vmem [shape: f32[2,32,32], index: 2, kind: input, shape index: {}]
  %s3 = inlined_call_operand.hbm [shape: f32[1,128], index: 3, kind: output, shape index: {}]
  %s4 = sld [smem:[#allocation0]]
  $region22: #{tpu_custom_call.1} parent=0
    _
  %s6 = ssub.s32 1, %s4
  %s7 = scalar_select 0, %s6, %s4
  $region1: #{tpu_custom_call.1} parent=0
    #allocation2 [shape = 'u8[512]{0}', space=vmem, size = 0x400, scoped, tag = 'output window, operand 0, single buffered']
    #allocation3 [shape = 's32[1]{0}', space=sflag, size = 0x4, scoped, tag = 'scoped memory for tpu_custom_call.1']
    %8 = vsyncpa [#allocation3], 0
    // Predicated region
    $region2: #{tpu_custom_call.1} parent=1 // pred_check
      _
    $region3: #{tpu_custom_call.1} parent=1 // pred_check_branch
      %10 = sbr.rel (0) target = $region5
    $region4: #{tpu_custom_call.1} parent=1 // pred_region
      _
    $region5: #{tpu_custom_call.1} parent=1 // pred_fallthru
      _
    // Predicated region
    $region6: #{tpu_custom_call.1} parent=1 // pred_check
      _
    $region7: #{tpu_custom_call.1} parent=1 // pred_check_branch
      %12 = sbr.rel (0) target = $region9
    $region8: #{tpu_custom_call.1} parent=1 // pred_region
      _
    $region9: #{tpu_custom_call.1} parent=1 // pred_fallthru
      _
    // Predicated region
    $region10: #{tpu_custom_call.1} parent=1 // pred_check
      _
    $region11: #{tpu_custom_call.1} parent=1 // pred_check_branch
      %14 = sbr.rel (0) target = $region13
    $region12: #{tpu_custom_call.1} parent=1 // pred_region
      _
    $region13: #{tpu_custom_call.1} parent=1 // pred_fallthru
      _
    %v15 = vld [vmem:[%s1] sm:$0xff]
    %v16 = vld [vmem:[%s1 + $0x8] sm:$0xff]
    %v17 = vld [vmem:[%s1 + $0x10] sm:$0xff]
    %v18 = vld [vmem:[%s1 + $0x18] sm:$0xff]
    %v19 = vld [vmem:[%s1] sm:$0x1]
    %v20 = vld [vmem:[%s2] sm:$0xff]
    %v21 = vld [vmem:[%s2 + $0x8] sm:$0xff]
    %v22 = vld [vmem:[%s2 + $0x10] sm:$0xff]
    %v23 = vld [vmem:[%s2 + $0x18] sm:$0xff]
    %s24 = scalar_lea.vmem %s2, 32
    %v25 = vld [vmem:[%s24] sm:$0xff]
    %v26 = vld [vmem:[%s24 + $0x8] sm:$0xff]
    %v27 = vld [vmem:[%s24 + $0x10] sm:$0xff]
    %v28 = vld [vmem:[%s24 + $0x18] sm:$0xff]
    %v29 = vld [vmem:[%s0] sm:$0xff]
    %v30 = vld [vmem:[%s0 + $0x8] sm:$0xff]
    %v31 = vld [vmem:[%s0 + $0x10] sm:$0xff]
    %v32 = vld [vmem:[%s0 + $0x18] sm:$0xff]
    %v33 = vld [vmem:[%s0 + $0x20] sm:$0xff]
    %v34 = vld [vmem:[%s0 + $0x28] sm:$0xff]
    %v35 = vld [vmem:[%s0 + $0x30] sm:$0xff]
    %v36 = vld [vmem:[%s0 + $0x38] sm:$0xff]
    %v37 = vld [vmem:[%s0 + $0x40] sm:$0xff]
    %v38 = vld [vmem:[%s0 + $0x48] sm:$0xff]
    %v39 = vld [vmem:[%s0 + $0x50] sm:$0xff]
    %v40 = vld [vmem:[%s0 + $0x58] sm:$0xff]
    %v41 = vld [vmem:[%s0 + $0x60] sm:$0xff]
    %v42 = vld [vmem:[%s0 + $0x68] sm:$0xff]
    %v43 = vld [vmem:[%s0 + $0x70] sm:$0xff]
    %v44 = vld [vmem:[%s0 + $0x78] sm:$0xff]
    %46 = vset.pattern.permute.xlu0 26
    %47 = vperm.xlu0 %46, %v15
    %v48 = vpop.permute.xlu0 %47
    %51 = vset.pattern.permute.xlu0 26
    %52 = vperm.xlu0 %51, %v16
    %v53 = vpop.permute.xlu0 %52
    %56 = vset.pattern.permute.xlu0 26
    %57 = vperm.xlu0 %56, %v17
    %v58 = vpop.permute.xlu0 %57
    %61 = vset.pattern.permute.xlu0 26
    %62 = vperm.xlu0 %61, %v18
    %v63 = vpop.permute.xlu0 %62
    %vm65 = vcmask 203776
    %v66 = vsel %vm65, %v15, 0
    %v68 = vsel %vm65, %v16, 0
    %v70 = vsel %vm65, %v17, 0
    %v72 = vsel %vm65, %v18, 0
    %v75 = vsel %vm65, %v29, 0
    %v78 = vsel %vm65, %v30, 0
    %v81 = vsel %vm65, %v31, 0
    %v84 = vsel %vm65, %v32, 0
    %v87 = vsel %vm65, %v33, 0
    %v90 = vsel %vm65, %v34, 0
    %v93 = vsel %vm65, %v35, 0
    %v96 = vsel %vm65, %v36, 0
    %v99 = vsel %vm65, %v37, 0
    %v102 = vsel %vm65, %v38, 0
    %v105 = vsel %vm65, %v39, 0
    %v108 = vsel %vm65, %v40, 0
    %v111 = vsel %vm65, %v41, 0
    %v114 = vsel %vm65, %v42, 0
    %v117 = vsel %vm65, %v43, 0
    %v120 = vsel %vm65, %v44, 0
    %122 = vmatprep.subr.mxu0 0.0
    %123 = vmatpush1.xpose.msra.mxu0 %v75
    %124 = vmatprep.subr.mxu0 0.0
    %125 = vmatpush1.xpose.msra.mxu0 %v78
    %126 = vmatprep.subr.mxu0 0.0
    %127 = vmatpush1.xpose.msra.mxu0 %v81
    %128 = vmatprep.subr.mxu0 0.0
    %129 = vmatpush1.xpose.msra.mxu0 %v84
    %130 = vmatprep.subr.mxu0 0.0
    %131 = vmatpush1.xpose.msra.mxu0 %v87
    %132 = vmatprep.subr.mxu0 0.0
    %133 = vmatpush1.xpose.msra.mxu0 %v90
    %134 = vmatprep.subr.mxu0 0.0
    %135 = vmatpush1.xpose.msra.mxu0 %v93
    %136 = vmatprep.subr.mxu0 0.0
    %137 = vmatpush1.xpose.msra.mxu0 %v96
    %138 = vmatprep.subr.mxu0 0.0
    %139 = vmatpush1.xpose.msra.mxu0 %v99
    %140 = vmatprep.subr.mxu0 0.0
    %141 = vmatpush1.xpose.msra.mxu0 %v102
    %142 = vmatprep.subr.mxu0 0.0
    %143 = vmatpush1.xpose.msra.mxu0 %v105
    %144 = vmatprep.subr.mxu0 0.0
    %145 = vmatpush1.xpose.msra.mxu0 %v108
    %146 = vmatprep.subr.mxu0 0.0
    %147 = vmatpush1.xpose.msra.mxu0 %v111
    %148 = vmatprep.subr.mxu0 0.0
    %149 = vmatpush1.xpose.msra.mxu0 %v114
    %150 = vmatprep.subr.mxu0 0.0
    %151 = vmatpush1.xpose.msra.mxu0 %v117
    %152 = vmatprep.subr.mxu0 0.0
    %153 = vmatpush1.xpose.msra.mxu0 %v120
    %154 = vmatprep.subr.mxu0 0.0
    %155 = vmatpush1.xpose.msra.mxu0 0.0
    %156 = vmatprep.subr.mxu0 0.0
    %157 = vmatpush1.xpose.msra.mxu0 0.0
    %158 = vmatprep.subr.mxu0 0.0
    %159 = vmatpush1.xpose.msra.mxu0 0.0
    %160 = vmatprep.subr.mxu0 0.0
    %161 = vmatpush1.xpose.msra.mxu0 0.0
    %162 = vmatprep.subr.mxu0 0.0
    %163 = vmatpush1.xpose.msra.mxu0 0.0
    %164 = vmatprep.subr.mxu0 0.0
    %165 = vmatpush1.xpose.msra.mxu0 0.0
    %166 = vmatprep.subr.mxu0 0.0
    %167 = vmatpush1.xpose.msra.mxu0 0.0
    %168 = vmatprep.subr.mxu0 0.0
    %169 = vmatpush1.xpose.msra.mxu0 0.0
    %170 = vmatprep.subr.mxu0 0.0
    %171 = vmatpush1.xpose.msra.mxu0 0.0
    %172 = vmatprep.subr.mxu0 0.0
    %173 = vmatpush1.xpose.msra.mxu0 0.0
    %174 = vmatprep.subr.mxu0 0.0
    %175 = vmatpush1.xpose.msra.mxu0 0.0
    %176 = vmatprep.subr.mxu0 0.0
    %177 = vmatpush1.xpose.msra.mxu0 0.0
    %178 = vmatprep.subr.mxu0 0.0
    %179 = vmatpush1.xpose.msra.mxu0 0.0
    %180 = vmatprep.subr.mxu0 0.0
    %181 = vmatpush1.xpose.msra.mxu0 0.0
    %182 = vmatprep.subr.mxu0 0.0
    %183 = vmatpush1.xpose.msra.mxu0 0.0
    %184 = vmatprep.subr.mxu0 0.0
    %185 = vmatpush1.xpose.msra.mxu0 0.0
    %186 = vmatprep.mubr.f32.mxu0 0.0
    %187 = vmatmul.mubr.f32.gmra.mrb[0].mxu0 %v66
    %v188 = vpop.f32.mrb[0].mxu0
    %v189 = vadd.f32 %v48, %v188
    %v190 = vpop.f32.mrb[0].mxu0
    %191 = vmatprep.mubr.f32.mxu0 0.0
    %192 = vmatmul.mubr.f32.gmra.mrb[0].mxu0 %v68
    %v193 = vpop.f32.mrb[0].mxu0
    %v194 = vadd.f32 %v53, %v193
    %v195 = vpop.f32.mrb[0].mxu0
    %196 = vmatprep.mubr.f32.mxu0 0.0
    %197 = vmatmul.mubr.f32.gmra.mrb[0].mxu0 %v70
    %v198 = vpop.f32.mrb[0].mxu0
    %v199 = vadd.f32 %v58, %v198
    %v200 = vpop.f32.mrb[0].mxu0
    %201 = vmatprep.mubr.f32.mxu0 0.0
    %202 = vmatmul.mubr.f32.gmra.mrb[0].mxu0 %v72
    %v203 = vpop.f32.mrb[0].mxu0
    %v204 = vadd.f32 %v63, %v203
    %v205 = vpop.f32.mrb[0].mxu0
    %206 = vdwg.mxu0
    %v207 = vmul.f32 %v189, 0.01
    %v208 = vmul.f32 %v194, 0.01
    %v209 = vmul.f32 %v199, 0.01
    %v210 = vmul.f32 %v204, 0.01
    %v211 = vmax.f32 %v189, %v207
    %v212 = vmax.f32 %v194, %v208
    %v213 = vmax.f32 %v199, %v209
    %v214 = vmax.f32 %v204, %v210
    %215 = vset.pattern.permute.xlu0 27
    %216 = vperm.xlu0 %215, %v15
    %v217 = vpop.permute.xlu0 %216
    %219 = vset.pattern.permute.xlu0 27
    %220 = vperm.xlu0 %219, %v16
    %v221 = vpop.permute.xlu0 %220
    %223 = vset.pattern.permute.xlu0 27
    %224 = vperm.xlu0 %223, %v17
    %v225 = vpop.permute.xlu0 %224
    %227 = vset.pattern.permute.xlu0 27
    %228 = vperm.xlu0 %227, %v18
    %v229 = vpop.permute.xlu0 %228
    %vm231 = vcmask 261120
    %v233 = vsel %vm231, %v20, 0
    %v236 = vsel %vm231, %v21, 0
    %v239 = vsel %vm231, %v22, 0
    %v242 = vsel %vm231, %v23, 0
    %244 = vmatprep.subr.mxu0 0.0
    %245 = vmatpush1.msra.mxu0 %v211
    %246 = vmatprep.subr.mxu0 0.0
    %247 = vmatpush1.msra.mxu0 %v212
    %248 = vmatprep.subr.mxu0 0.0
    %249 = vmatpush1.msra.mxu0 %v213
    %250 = vmatprep.subr.mxu0 0.0
    %251 = vmatpush1.msra.mxu0 %v214
    %252 = vmatprep.subr.mxu0 0.0
    %253 = vmatpush1.msra.mxu0 0.0
    %254 = vmatprep.subr.mxu0 0.0
    %255 = vmatpush1.msra.mxu0 0.0
    %256 = vmatprep.subr.mxu0 0.0
    %257 = vmatpush1.msra.mxu0 0.0
    %258 = vmatprep.subr.mxu0 0.0
    %259 = vmatpush1.msra.mxu0 0.0
    %260 = vmatprep.subr.mxu0 0.0
    %261 = vmatpush1.msra.mxu0 0.0
    %262 = vmatprep.subr.mxu0 0.0
    %263 = vmatpush1.msra.mxu0 0.0
    %264 = vmatprep.subr.mxu0 0.0
    %265 = vmatpush1.msra.mxu0 0.0
    %266 = vmatprep.subr.mxu0 0.0
    %267 = vmatpush1.msra.mxu0 0.0
    %268 = vmatprep.subr.mxu0 0.0
    %269 = vmatpush1.msra.mxu0 0.0
    %270 = vmatprep.subr.mxu0 0.0
    %271 = vmatpush1.msra.mxu0 0.0
    %272 = vmatprep.subr.mxu0 0.0
    %273 = vmatpush1.msra.mxu0 0.0
    %274 = vmatprep.subr.mxu0 0.0
    %275 = vmatpush1.msra.mxu0 0.0
    %276 = vmatprep.subr.mxu0 0.0
    %277 = vmatpush1.msra.mxu0 0.0
    %278 = vmatprep.subr.mxu0 0.0
    %279 = vmatpush1.msra.mxu0 0.0
    %280 = vmatprep.subr.mxu0 0.0
    %281 = vmatpush1.msra.mxu0 0.0
    %282 = vmatprep.subr.mxu0 0.0
    %283 = vmatpush1.msra.mxu0 0.0
    %284 = vmatprep.subr.mxu0 0.0
    %285 = vmatpush1.msra.mxu0 0.0
    %286 = vmatprep.subr.mxu0 0.0
    %287 = vmatpush1.msra.mxu0 0.0
    %288 = vmatprep.subr.mxu0 0.0
    %289 = vmatpush1.msra.mxu0 0.0
    %290 = vmatprep.subr.mxu0 0.0
    %291 = vmatpush1.msra.mxu0 0.0
    %292 = vmatprep.subr.mxu0 0.0
    %293 = vmatpush1.msra.mxu0 0.0
    %294 = vmatprep.subr.mxu0 0.0
    %295 = vmatpush1.msra.mxu0 0.0
    %296 = vmatprep.subr.mxu0 0.0
    %297 = vmatpush1.msra.mxu0 0.0
    %298 = vmatprep.subr.mxu0 0.0
    %299 = vmatpush1.msra.mxu0 0.0
    %300 = vmatprep.subr.mxu0 0.0
    %301 = vmatpush1.msra.mxu0 0.0
    %302 = vmatprep.subr.mxu0 0.0
    %303 = vmatpush1.msra.mxu0 0.0
    %304 = vmatprep.subr.mxu0 0.0
    %305 = vmatpush1.msra.mxu0 0.0
    %306 = vmatprep.subr.mxu0 0.0
    %307 = vmatpush1.msra.mxu0 0.0
    %308 = vmatprep.mubr.f32.mxu0 0.0
    %309 = vmatmul.mubr.f32.gmra.mrb[0].mxu0 %v233
    %v310 = vpop.f32.mrb[0].mxu0
    %v311 = vadd.f32 %v217, %v310
    %v312 = vpop.f32.mrb[0].mxu0
    %313 = vmatprep.mubr.f32.mxu0 0.0
    %314 = vmatmul.mubr.f32.gmra.mrb[0].mxu0 %v236
    %v315 = vpop.f32.mrb[0].mxu0
    %v316 = vadd.f32 %v221, %v315
    %v317 = vpop.f32.mrb[0].mxu0
    %318 = vmatprep.mubr.f32.mxu0 0.0
    %319 = vmatmul.mubr.f32.gmra.mrb[0].mxu0 %v239
    %v320 = vpop.f32.mrb[0].mxu0
    %v321 = vadd.f32 %v225, %v320
    %v322 = vpop.f32.mrb[0].mxu0
    %323 = vmatprep.mubr.f32.mxu0 0.0
    %324 = vmatmul.mubr.f32.gmra.mrb[0].mxu0 %v242
    %v325 = vpop.f32.mrb[0].mxu0
    %v326 = vadd.f32 %v229, %v325
    %v327 = vpop.f32.mrb[0].mxu0
    %328 = vdwg.mxu0
    %v329 = vmul.f32 %v311, 0.01
    %v330 = vmul.f32 %v316, 0.01
    %v331 = vmul.f32 %v321, 0.01
    %v332 = vmul.f32 %v326, 0.01
    %v333 = vmax.f32 %v311, %v329
    %v334 = vmax.f32 %v316, %v330
    %v335 = vmax.f32 %v321, %v331
    %v336 = vmax.f32 %v326, %v332
    %337 = vset.pattern.permute.xlu0 28
    %338 = vperm.xlu0 %337, %v15
    %v339 = vpop.permute.xlu0 %338
    %341 = vset.pattern.permute.xlu0 28
    %342 = vperm.xlu0 %341, %v16
    %v343 = vpop.permute.xlu0 %342
    %345 = vset.pattern.permute.xlu0 28
    %346 = vperm.xlu0 %345, %v17
    %v347 = vpop.permute.xlu0 %346
    %349 = vset.pattern.permute.xlu0 28
    %350 = vperm.xlu0 %349, %v18
    %v351 = vpop.permute.xlu0 %350
    %v354 = vsel %vm231, %v25, 0
    %v357 = vsel %vm231, %v26, 0
    %v360 = vsel %vm231, %v27, 0
    %v363 = vsel %vm231, %v28, 0
    %365 = vmatprep.subr.mxu0 0.0
    %366 = vmatpush1.msra.mxu0 %v333
    %367 = vmatprep.subr.mxu0 0.0
    %368 = vmatpush1.msra.mxu0 %v334
    %369 = vmatprep.subr.mxu0 0.0
    %370 = vmatpush1.msra.mxu0 %v335
    %371 = vmatprep.subr.mxu0 0.0
    %372 = vmatpush1.msra.mxu0 %v336
    %373 = vmatprep.subr.mxu0 0.0
    %374 = vmatpush1.msra.mxu0 0.0
    %375 = vmatprep.subr.mxu0 0.0
    %376 = vmatpush1.msra.mxu0 0.0
    %377 = vmatprep.subr.mxu0 0.0
    %378 = vmatpush1.msra.mxu0 0.0
    %379 = vmatprep.subr.mxu0 0.0
    %380 = vmatpush1.msra.mxu0 0.0
    %381 = vmatprep.subr.mxu0 0.0
    %382 = vmatpush1.msra.mxu0 0.0
    %383 = vmatprep.subr.mxu0 0.0
    %384 = vmatpush1.msra.mxu0 0.0
    %385 = vmatprep.subr.mxu0 0.0
    %386 = vmatpush1.msra.mxu0 0.0
    %387 = vmatprep.subr.mxu0 0.0
    %388 = vmatpush1.msra.mxu0 0.0
    %389 = vmatprep.subr.mxu0 0.0
    %390 = vmatpush1.msra.mxu0 0.0
    %391 = vmatprep.subr.mxu0 0.0
    %392 = vmatpush1.msra.mxu0 0.0
    %393 = vmatprep.subr.mxu0 0.0
    %394 = vmatpush1.msra.mxu0 0.0
    %395 = vmatprep.subr.mxu0 0.0
    %396 = vmatpush1.msra.mxu0 0.0
    %397 = vmatprep.subr.mxu0 0.0
    %398 = vmatpush1.msra.mxu0 0.0
    %399 = vmatprep.subr.mxu0 0.0
    %400 = vmatpush1.msra.mxu0 0.0
    %401 = vmatprep.subr.mxu0 0.0
    %402 = vmatpush1.msra.mxu0 0.0
    %403 = vmatprep.subr.mxu0 0.0
    %404 = vmatpush1.msra.mxu0 0.0
    %405 = vmatprep.subr.mxu0 0.0
    %406 = vmatpush1.msra.mxu0 0.0
    %407 = vmatprep.subr.mxu0 0.0
    %408 = vmatpush1.msra.mxu0 0.0
    %409 = vmatprep.subr.mxu0 0.0
    %410 = vmatpush1.msra.mxu0 0.0
    %411 = vmatprep.subr.mxu0 0.0
    %412 = vmatpush1.msra.mxu0 0.0
    %413 = vmatprep.subr.mxu0 0.0
    %414 = vmatpush1.msra.mxu0 0.0
    %415 = vmatprep.subr.mxu0 0.0
    %416 = vmatpush1.msra.mxu0 0.0
    %417 = vmatprep.subr.mxu0 0.0
    %418 = vmatpush1.msra.mxu0 0.0
    %419 = vmatprep.subr.mxu0 0.0
    %420 = vmatpush1.msra.mxu0 0.0
    %421 = vmatprep.subr.mxu0 0.0
    %422 = vmatpush1.msra.mxu0 0.0
    %423 = vmatprep.subr.mxu0 0.0
    %424 = vmatpush1.msra.mxu0 0.0
    %425 = vmatprep.subr.mxu0 0.0
    %426 = vmatpush1.msra.mxu0 0.0
    %427 = vmatprep.subr.mxu0 0.0
    %428 = vmatpush1.msra.mxu0 0.0
    %429 = vmatprep.mubr.f32.mxu0 0.0
    %430 = vmatmul.mubr.f32.gmra.mrb[0].mxu0 %v354
    %v431 = vpop.f32.mrb[0].mxu0
    %v432 = vadd.f32 %v339, %v431
    %v433 = vpop.f32.mrb[0].mxu0
    %434 = vmatprep.mubr.f32.mxu0 0.0
    %435 = vmatmul.mubr.f32.gmra.mrb[0].mxu0 %v357
    %v436 = vpop.f32.mrb[0].mxu0
    %v437 = vadd.f32 %v343, %v436
    %v438 = vpop.f32.mrb[0].mxu0
    %439 = vmatprep.mubr.f32.mxu0 0.0
    %440 = vmatmul.mubr.f32.gmra.mrb[0].mxu0 %v360
    %v441 = vpop.f32.mrb[0].mxu0
    %v442 = vadd.f32 %v347, %v441
    %v443 = vpop.f32.mrb[0].mxu0
    %444 = vmatprep.mubr.f32.mxu0 0.0
    %445 = vmatmul.mubr.f32.gmra.mrb[0].mxu0 %v363
    %v446 = vpop.f32.mrb[0].mxu0
    %v447 = vadd.f32 %v351, %v446
    %v448 = vpop.f32.mrb[0].mxu0
    %449 = vdwg.mxu0
    %v450 = vmul.f32 %v432, 0.01
    %v451 = vmul.f32 %v437, 0.01
    %v452 = vmul.f32 %v442, 0.01
    %v453 = vmul.f32 %v447, 0.01
    %v454 = vmax.f32 %v432, %v450
    %v455 = vmax.f32 %v437, %v451
    %v456 = vmax.f32 %v442, %v452
    %v457 = vmax.f32 %v447, %v453
    %458 = vset.pattern.permute.xlu0 25
    %459 = vperm.xlu0 %458, %v15
    %v460 = vpop.permute.xlu0 %459
    %462 = vset.pattern.permute.xlu0 25
    %463 = vperm.xlu0 %462, %v16
    %v464 = vpop.permute.xlu0 %463
    %466 = vset.pattern.permute.xlu0 25
    %467 = vperm.xlu0 %466, %v17
    %v468 = vpop.permute.xlu0 %467
    %470 = vset.pattern.permute.xlu0 25
    %471 = vperm.xlu0 %470, %v18
    %v472 = vpop.permute.xlu0 %471
    %v474 = vmul.f32 %v454, %v460
    %v475 = vmul.f32 %v455, %v464
    %v476 = vmul.f32 %v456, %v468
    %v477 = vmul.f32 %v457, %v472
    %v478 = vadd.f32 %v474, %v475
    %v479 = vadd.f32 %v478, %v476
    %v480 = vadd.f32 %v479, %v477
    %v481 = vrot.slane %v480, 4
    %v482 = vadd.f32 %v480, %v481
    %v483 = vrot.slane %v482, 2
    %v484 = vadd.f32 %v482, %v483
    %v485 = vrot.slane %v484, 1
    %v486 = vadd.f32 %v484, %v485
    %488 = vset.pattern.permute.xlu0 29
    %489 = vperm.xlu0 %488, %v19
    %v490 = vpop.permute.xlu0 %489
    %v492 = vadd.f32 %v486, %v490
    %493 = vst [vmem:[#allocation2] sm:$0x1] %v492
    // Predicated region
    $region14: #{tpu_custom_call.1} parent=1 // pred_check
      _
    $region15: #{tpu_custom_call.1} parent=1 // pred_check_branch
      %495 = sbr.rel (0) target = $region17
    $region16: #{tpu_custom_call.1} parent=1 // pred_region
      %s497 = ssub.s32 16, 16
      %498 = vsyncadd [#allocation3], %s497
      %s500 = sshll.u32 [#allocation2], 4
      %s501 = int_to_ptr.vmem [resolvable:$true] %s500
      %503 = dma.vmem_to_hbm [thread:$0]  %s501, 16, %s3, [#allocation3]
    $region17: #{tpu_custom_call.1} parent=1 // pred_fallthru
      _
    // Predicated region
    $region18: #{tpu_custom_call.1} parent=1 // pred_check
      _
    $region19: #{tpu_custom_call.1} parent=1 // pred_check_branch
      %505 = sbr.rel (0) target = $region21
    $region20: #{tpu_custom_call.1} parent=1 // pred_region
      %506 = dma.done [#allocation3], 16
    $region21: #{tpu_custom_call.1} parent=1 // pred_fallthru
      _
    %507 = vsyncpa [#allocation3], 1

</llo_original>
